<compile_context>
chip_gen: v5e
topology: v5e:2x2
jax: 0.10.0
libtpu: 0.0.40
codegen_flags: <defaults>
</compile_context>

<pallas_src>
import functools

import jax
import jax.numpy as jnp
from jax.experimental import pallas as pl
from jax.experimental.pallas import tpu as pltpu

_NEG_LARGE = -1e30   # finite "-inf" for the running max
_MASK_VALUE = -1e9   # matches masked_fill(mask != 0, -1e9)


def _flash_body(q_ref, k_ref, v_ref, mask_ref, o_ref, m_sc, l_sc, acc_sc, *,
                scale, kv_len, block_kv, compute_dtype, kv_padded):
    """Online-softmax attention over one (b, head-block, q-tile, kv-tile) step."""
    kv = pl.program_id(3)

    @pl.when(kv == 0)
    def _():
        m_sc[...] = jnp.full_like(m_sc, _NEG_LARGE)
        l_sc[...] = jnp.zeros_like(l_sc)
        acc_sc[...] = jnp.zeros_like(acc_sc)

    # Fold 1/temperature into the (small) q tile: tq*Dk multiplies instead of tq*tk.
    q = (q_ref[0] * scale).astype(compute_dtype)   # (bh, tq, Dk)
    k = k_ref[0].astype(compute_dtype)             # (bh, tk, Dk)

    # QK^T on the MXU (bf16 operands, f32 accumulate); contraction on last dims of
    # both operands -> no transpose of k.
    s = jnp.einsum("hqd,hkd->hqk", q, k, preferred_element_type=jnp.float32)

    if mask_ref is not None:
        # mask tile in its natural broadcastable shape; nonzero -> masked.
        s = jnp.where(mask_ref[0] != 0, _MASK_VALUE, s)

    if kv_padded:
        # Disable keys that only exist because Lk was padded to a tile multiple.
        kid = jax.lax.broadcasted_iota(jnp.int32, (1, 1, s.shape[-1]), 2)
        s = jnp.where(kid < (kv_len - kv * block_kv), s, _MASK_VALUE)

    m_prev = m_sc[...]
    m_new = jnp.maximum(m_prev, jnp.max(s, axis=-1, keepdims=True))
    alpha = jnp.exp(m_prev - m_new)
    # TODO(synk): on v6e/v7x exp could run in bf16 (bf16 EUP) to halve EUP work for
    # small head dims; kept in f32 for accuracy (v5e has no bf16 EUP).
    p = jnp.exp(s - m_new)

    l_sc[...] = alpha * l_sc[...] + jnp.sum(p, axis=-1, keepdims=True)
    acc_sc[...] = alpha * acc_sc[...] + jnp.einsum(
        "hqk,hkd->hqd",
        p.astype(compute_dtype), v_ref[0].astype(compute_dtype),
        preferred_element_type=jnp.float32)
    m_sc[...] = m_new

    # TODO(synk): nn.Dropout(attn_dropout) on the attention weights is omitted
    # (identity in eval mode).

    @pl.when(kv == pl.num_programs(3) - 1)
    def _():
        inv_l = pl.reciprocal(l_sc[...], approx=False)   # exact; once per q tile
        o_ref[0] = (acc_sc[...] * inv_l).astype(o_ref.dtype)


def _kernel_masked(q_ref, k_ref, v_ref, mask_ref, o_ref, m_sc, l_sc, acc_sc, **kw):
    _flash_body(q_ref, k_ref, v_ref, mask_ref, o_ref, m_sc, l_sc, acc_sc, **kw)


def _kernel_unmasked(q_ref, k_ref, v_ref, o_ref, m_sc, l_sc, acc_sc, **kw):
    _flash_body(q_ref, k_ref, v_ref, None, o_ref, m_sc, l_sc, acc_sc, **kw)


def _round_up(x, m):
    return (x + m - 1) // m * m


def scaled_dot_product_attention(q, k, v, mask=None, *, temperature,
                                 block_q=256, block_k=256, block_h=None,
                                 compute_dtype=jnp.bfloat16):
    """q: [B,H,Lq,Dk], k: [B,H,Lk,Dk], v: [B,H,Lk,Dv]; mask broadcastable to [B,H,Lq,Lk]."""
    B, H, Lq, Dk = q.shape
    _, _, Lk, _ = k.shape
    Dv = v.shape[-1]
    scale = 1.0 / float(temperature)
    out_dtype = q.dtype

    # Head batching: amortize per-step overhead without blowing up the f32 score
    # tile / k,v tiles / lane-padded m,l scratches (cap at 4 heads per step).
    if block_h is None:
        block_h = 1 if Dk >= 128 else min(H, 4)
    block_h = max(1, min(block_h, H))
    while H % block_h:
        block_h -= 1

    # Tile sizes: q tiles multiple of 8 (sublanes), k tiles multiple of 128 (lanes)
    # unless the full dimension fits in one tile.
    block_q = max(8, (block_q // 8) * 8)
    block_k = max(128, (block_k // 128) * 128)
    if Lq <= block_q:
        tq, Lq_p = Lq, Lq
    else:
        tq, Lq_p = block_q, _round_up(Lq, block_q)
    if Lk <= block_k:
        tk, Lk_p = Lk, Lk
    else:
        tk, Lk_p = block_k, _round_up(Lk, block_k)

    if Lq_p != Lq:
        q = jnp.pad(q, ((0, 0), (0, 0), (0, Lq_p - Lq), (0, 0)))
    if Lk_p != Lk:
        k = jnp.pad(k, ((0, 0), (0, 0), (0, Lk_p - Lk), (0, 0)))
        v = jnp.pad(v, ((0, 0), (0, 0), (0, Lk_p - Lk), (0, 0)))

    grid = (B, H // block_h, Lq_p // tq, Lk_p // tk)

    q_spec = pl.BlockSpec((1, block_h, tq, Dk), lambda b, h, i, j: (b, h, i, 0))
    k_spec = pl.BlockSpec((1, block_h, tk, Dk), lambda b, h, i, j: (b, h, j, 0))
    v_spec = pl.BlockSpec((1, block_h, tk, Dv), lambda b, h, i, j: (b, h, j, 0))
    o_spec = pl.BlockSpec((1, block_h, tq, Dv), lambda b, h, i, j: (b, h, i, 0))

    scratch = [
        pltpu.VMEM((block_h, tq, 1), jnp.float32),    # running max
        pltpu.VMEM((block_h, tq, 1), jnp.float32),    # running sum
        pltpu.VMEM((block_h, tq, Dv), jnp.float32),   # output accumulator
    ]

    # Explicit VMEM budget so v5e (16 MiB scoped default) / v7x (32 MiB) keep
    # double-buffering alive; rough estimate with ~2x headroom.
    itm = jnp.dtype(q.dtype).itemsize
    tile_bytes = (block_h * tq * Dk + block_h * tk * Dk
                  + block_h * tk * Dv + block_h * tq * Dv) * itm
    scratch_bytes = (2 * block_h * tq * 128 + block_h * tq * Dv) * 4
    score_bytes = block_h * tq * tk * 4
    est = 2 * tile_bytes + scratch_bytes + 3 * score_bytes
    vmem_limit = int(min(100 * 2 ** 20, max(32 * 2 ** 20, 2 * est)))

    compiler_params = pltpu.CompilerParams(
        dimension_semantics=("parallel", "parallel", "parallel", "arbitrary"),
        vmem_limit_bytes=vmem_limit,
    )
    out_shape = jax.ShapeDtypeStruct((B, H, Lq_p, Dv), out_dtype)

    common = dict(scale=scale, kv_len=Lk, block_kv=tk,
                  compute_dtype=compute_dtype, kv_padded=(Lk_p != Lk))

    in_specs = [q_spec, k_spec, v_spec]
    args = [q, k, v]

    # TODO(synk): block-level mask skipping (scalar-prefetch a per-(q,k)-block mask
    # + pl.when around the body) would skip fully-masked kv tiles for causal /
    # padding masks; not implemented here.
    if mask is not None:
        mask = jnp.asarray(mask)
        if mask.ndim < 4:                               # PyTorch-style left broadcast
            mask = mask.reshape((1,) * (4 - mask.ndim) + mask.shape)
        mB, mH, mLq, mLk = mask.shape
        for name, got, full in (("batch", mB, B), ("head", mH, H),
                                ("query", mLq, Lq), ("key", mLk, Lk)):
            if got not in (1, full):
                raise ValueError(f"mask {name} dim {got} not broadcastable to {full}")
        # Keep the mask in its natural broadcastable shape (no B*H*Lq*Lk copy in HBM).
        mask = mask.astype(jnp.int32)
        full_b, full_h, full_q, full_k = (mB == B), (mH == H), (mLq == Lq), (mLk == Lk)
        if full_q and Lq_p != Lq:
            mask = jnp.pad(mask, ((0, 0), (0, 0), (0, Lq_p - Lq), (0, 0)))
        if full_k and Lk_p != Lk:
            mask = jnp.pad(mask, ((0, 0), (0, 0), (0, 0), (0, Lk_p - Lk)))

        m_blk = (1,
                 block_h if full_h else 1,
                 tq if full_q else 1,
                 tk if full_k else 1)

        def mask_index_map(b, h, i, j):
            return (b if full_b else 0,
                    h if full_h else 0,
                    i if full_q else 0,
                    j if full_k else 0)

        in_specs.append(pl.BlockSpec(m_blk, mask_index_map))
        args.append(mask)
        kernel = functools.partial(_kernel_masked, **common)
    else:
        kernel = functools.partial(_kernel_unmasked, **common)

    out = pl.pallas_call(
        kernel,
        out_shape=out_shape,
        grid_spec=pltpu.PrefetchScalarGridSpec(
            num_scalar_prefetch=0,
            grid=grid,
            in_specs=in_specs,
            out_specs=o_spec,
            scratch_shapes=scratch,
        ),
        compiler_params=compiler_params,
    )(*args)

    if Lq_p != Lq:
        out = out[:, :, :Lq, :]
    return out


def _reference(q, k, v, mask, temperature):
    attn = jnp.einsum("bhqd,bhkd->bhqk", q / temperature, k,
                      precision=jax.lax.Precision.HIGHEST)
    if mask is not None:
        attn = jnp.where(mask != 0, -1e9, attn)
    attn = jax.nn.softmax(attn, axis=-1)
    return jnp.einsum("bhqk,bhkd->bhqd", attn, v,
                      precision=jax.lax.Precision.HIGHEST)


if __name__ == "__main__":
    k1, k2, k3, k4, k5, k6, k7, k8 = jax.random.split(jax.random.PRNGKey(0), 8)
    # bf16 MXU operands vs f32 reference -> bf16-appropriate tolerance.
    TOL = dict(atol=3e-2, rtol=3e-2)

    # --- config 1: single kv tile, broadcastable [B,1,1,Lk] padding-style mask ---
    B, H, Lq, Lk, Dk, Dv = 2, 2, 8, 8, 32, 32
    temperature = float(Dk) ** 0.5
    q1 = jax.random.normal(k1, (B, H, Lq, Dk), jnp.float32)
    kk1 = jax.random.normal(k2, (B, H, Lk, Dk), jnp.float32)
    v1 = jax.random.normal(k3, (B, H, Lk, Dv), jnp.float32)
    mask1 = (jax.random.uniform(k4, (B, 1, 1, Lk)) > 0.8).astype(jnp.int32)

    out1 = jax.block_until_ready(
        scaled_dot_product_attention(q1, kk1, v1, mask1, temperature=temperature))
    ref1 = _reference(q1, kk1, v1, mask1, temperature)
    assert out1.shape == (B, H, Lq, Dv)
    assert jnp.allclose(out1, ref1, **TOL), "mismatch vs reference (broadcast mask)"

    out_nm = jax.block_until_ready(
        scaled_dot_product_attention(q1, kk1, v1, None, temperature=temperature))
    ref_nm = _reference(q1, kk1, v1, None, temperature)
    assert jnp.allclose(out_nm, ref_nm, **TOL), "mismatch vs reference (no mask)"

    # --- config 2: multi-tile kv loop + non-tile-multiple key length (padding path) ---
    B, H, Lq, Lk, Dk, Dv = 2, 4, 16, 160, 32, 32
    temperature = float(Dk) ** 0.5
    q2 = jax.random.normal(k5, (B, H, Lq, Dk), jnp.float32)
    kk2 = jax.random.normal(k6, (B, H, Lk, Dk), jnp.float32)
    v2 = jax.random.normal(k7, (B, H, Lk, Dv), jnp.float32)
    mask2 = (jax.random.uniform(k8, (1, 1, Lq, Lk)) > 0.8).astype(jnp.int32)

    out2 = jax.block_until_ready(
        scaled_dot_product_attention(q2, kk2, v2, mask2, temperature=temperature,
                                     block_q=8, block_k=128))
    ref2 = _reference(q2, kk2, v2, mask2, temperature)
    assert out2.shape == (B, H, Lq, Dv)
    assert jnp.allclose(out2, ref2, **TOL), "mismatch vs reference (tiled/padded)"

    print("KERNEL_OK")
</pallas_src>

<mosaic_0001>
module attributes {stable_mosaic.version = 11 : i64} {
  func.func @_kernel_masked(%arg0: i32, %arg1: i32, %arg2: i32, %arg3: i32, %arg4: memref<1x2x8x32xf32, #tpu.memory_space<vmem>>, %arg5: memref<1x2x8x32xf32, #tpu.memory_space<vmem>>, %arg6: memref<1x2x8x32xf32, #tpu.memory_space<vmem>>, %arg7: memref<1x1x1x8xi32, #tpu.memory_space<vmem>>, %arg8: memref<1x2x8x32xf32, #tpu.memory_space<vmem>>, %arg9: memref<2x8x1xf32, #tpu.memory_space<vmem>>, %arg10: memref<2x8x1xf32, #tpu.memory_space<vmem>>, %arg11: memref<2x8x32xf32, #tpu.memory_space<vmem>>) attributes {dimension_semantics = [#tpu.dimension_semantics<parallel>, #tpu.dimension_semantics<parallel>, #tpu.dimension_semantics<parallel>, #tpu.dimension_semantics<arbitrary>], iteration_bounds = array<i64: 2, 1, 1, 1>, scalar_prefetch = 0 : i64, scratch_operands = 3 : i64, tpu.core_type = #tpu.core_type<tc>, window_params = [{transform_indices = @transform_0, window_bounds = array<i64: 1, 2, 8, 32>}, {transform_indices = @transform_1, window_bounds = array<i64: 1, 2, 8, 32>}, {transform_indices = @transform_2, window_bounds = array<i64: 1, 2, 8, 32>}, {transform_indices = @transform_3, window_bounds = array<i64: 1, 1, 1, 8>}, {transform_indices = @transform_4, window_bounds = array<i64: 1, 2, 8, 32>}]} {
    %c0_i32 = arith.constant 0 : i32
    %0 = arith.cmpi eq, %arg3, %c0_i32 : i32
    %1 = arith.extui %0 : i1 to i32
    %c0_i32_0 = arith.constant 0 : i32
    %2 = arith.cmpi ne, %1, %c0_i32_0 : i32
    scf.if %2 {
      %cst_42 = arith.constant -1.000000e+30 : f32
      %49 = vector.broadcast %cst_42 : f32 to vector<2x8x1xf32>
      %c0_43 = arith.constant 0 : index
      %c0_44 = arith.constant 0 : index
      %c0_45 = arith.constant 0 : index
      %50 = vector.load %arg9[%c0_43, %c0_44, %c0_45] : memref<2x8x1xf32, #tpu.memory_space<vmem>>, vector<2x8x1xf32>
      tpu.vector_store %arg9[%c0_43, %c0_44, %c0_45], %49 {strides = array<i32>} : memref<2x8x1xf32, #tpu.memory_space<vmem>>, vector<2x8x1xf32>,
      %cst_46 = arith.constant 0.000000e+00 : f32
      %51 = vector.broadcast %cst_46 : f32 to vector<2x8x1xf32>
      %c0_47 = arith.constant 0 : index
      %c0_48 = arith.constant 0 : index
      %c0_49 = arith.constant 0 : index
      %52 = vector.load %arg10[%c0_47, %c0_48, %c0_49] : memref<2x8x1xf32, #tpu.memory_space<vmem>>, vector<2x8x1xf32>
      tpu.vector_store %arg10[%c0_47, %c0_48, %c0_49], %51 {strides = array<i32>} : memref<2x8x1xf32, #tpu.memory_space<vmem>>, vector<2x8x1xf32>,
      %cst_50 = arith.constant 0.000000e+00 : f32
      %53 = vector.broadcast %cst_50 : f32 to vector<2x8x32xf32>
      %c0_51 = arith.constant 0 : index
      %c0_52 = arith.constant 0 : index
      %c0_53 = arith.constant 0 : index
      %54 = vector.load %arg11[%c0_51, %c0_52, %c0_53] : memref<2x8x32xf32, #tpu.memory_space<vmem>>, vector<2x8x32xf32>
      tpu.vector_store %arg11[%c0_51, %c0_52, %c0_53], %53 {strides = array<i32>} : memref<2x8x32xf32, #tpu.memory_space<vmem>>, vector<2x8x32xf32>,
    } else {
    }
    %c0 = arith.constant 0 : index
    %c0_1 = arith.constant 0 : index
    %c0_2 = arith.constant 0 : index
    %c0_3 = arith.constant 0 : index
    %3 = vector.load %arg4[%c0, %c0_1, %c0_2, %c0_3] : memref<1x2x8x32xf32, #tpu.memory_space<vmem>>, vector<1x2x8x32xf32>
    %4 = vector.shape_cast %3 : vector<1x2x8x32xf32> to vector<2x8x32xf32>
    %cst = arith.constant 0.176776692 : f32
    %5 = vector.broadcast %cst : f32 to vector<2x8x32xf32>
    %6 = arith.mulf %4, %5 : vector<2x8x32xf32>
    %7 = arith.truncf %6 : vector<2x8x32xf32> to vector<2x8x32xbf16>
    %c0_4 = arith.constant 0 : index
    %c0_5 = arith.constant 0 : index
    %c0_6 = arith.constant 0 : index
    %c0_7 = arith.constant 0 : index
    %8 = vector.load %arg5[%c0_4, %c0_5, %c0_6, %c0_7] : memref<1x2x8x32xf32, #tpu.memory_space<vmem>>, vector<1x2x8x32xf32>
    %9 = vector.shape_cast %8 : vector<1x2x8x32xf32> to vector<2x8x32xf32>
    %10 = arith.truncf %9 : vector<2x8x32xf32> to vector<2x8x32xbf16>
    "tpu.trace_start"() <{level = 10 : i32, message = "hqd,hkd->hqk"}> : () -> ()
    %cst_8 = arith.constant dense<0.000000e+00> : vector<2x8x8xf32>
    %11 = tpu.matmul %7, %10, %cst_8 {dimension_numbers = #tpu.dot_dimension_numbers<[2], [2], [1], [1], [0, 0, 0, 1, 1, 1], [0], [0]>} : vector<2x8x32xbf16>, vector<2x8x32xbf16>, vector<2x8x8xf32> -> vector<2x8x8xf32>
    "tpu.trace_stop"() : () -> ()
    %c0_9 = arith.constant 0 : index
    %c0_10 = arith.constant 0 : index
    %c0_11 = arith.constant 0 : index
    %c0_12 = arith.constant 0 : index
    %12 = vector.load %arg7[%c0_9, %c0_10, %c0_11, %c0_12] : memref<1x1x1x8xi32, #tpu.memory_space<vmem>>, vector<1x1x1x8xi32>
    %13 = vector.shape_cast %12 : vector<1x1x1x8xi32> to vector<1x1x8xi32>
    %c0_i32_13 = arith.constant 0 : i32
    %14 = vector.broadcast %c0_i32_13 : i32 to vector<1x1x8xi32>
    %15 = arith.cmpi ne, %13, %14 : vector<1x1x8xi32>
    %cst_14 = arith.constant -1.000000e+09 : f32
    %16 = vector.shape_cast %15 : vector<1x1x8xi1> to vector<1x1x8xi1>
    %17 = vector.broadcast %16 : vector<1x1x8xi1> to vector<2x8x8xi1>
    %18 = vector.broadcast %cst_14 : f32 to vector<2x8x8xf32>
    %19 = arith.select %17, %18, %11 : vector<2x8x8xi1>, vector<2x8x8xf32>
    %c0_15 = arith.constant 0 : index
    %c0_16 = arith.constant 0 : index
    %c0_17 = arith.constant 0 : index
    %20 = vector.load %arg9[%c0_15, %c0_16, %c0_17] : memref<2x8x1xf32, #tpu.memory_space<vmem>>, vector<2x8x1xf32>
    %cst_18 = arith.constant dense<0xFF800000> : vector<2x8xf32>
    %21 = vector.multi_reduction <maximumf>, %19, %cst_18 [2] : vector<2x8x8xf32> to vector<2x8xf32>
    %22 = vector.shape_cast %21 : vector<2x8xf32> to vector<2x8x1xf32>
    %23 = arith.maximumf %20, %22 : vector<2x8x1xf32>
    %24 = arith.subf %20, %23 : vector<2x8x1xf32>
    %25 = math.exp %24 : vector<2x8x1xf32>
    %26 = vector.broadcast %23 : vector<2x8x1xf32> to vector<2x8x8xf32>
    %27 = arith.subf %19, %26 : vector<2x8x8xf32>
    %28 = math.exp %27 : vector<2x8x8xf32>
    %c0_19 = arith.constant 0 : index
    %c0_20 = arith.constant 0 : index
    %c0_21 = arith.constant 0 : index
    %29 = vector.load %arg10[%c0_19, %c0_20, %c0_21] : memref<2x8x1xf32, #tpu.memory_space<vmem>>, vector<2x8x1xf32>
    %30 = arith.mulf %25, %29 : vector<2x8x1xf32>
    %cst_22 = arith.constant dense<0.000000e+00> : vector<2x8xf32>
    %31 = vector.multi_reduction <add>, %28, %cst_22 [2] : vector<2x8x8xf32> to vector<2x8xf32>
    %32 = vector.shape_cast %31 : vector<2x8xf32> to vector<2x8x1xf32>
    %33 = arith.addf %30, %32 : vector<2x8x1xf32>
    %c0_23 = arith.constant 0 : index
    %c0_24 = arith.constant 0 : index
    %c0_25 = arith.constant 0 : index
    %34 = vector.load %arg10[%c0_23, %c0_24, %c0_25] : memref<2x8x1xf32, #tpu.memory_space<vmem>>, vector<2x8x1xf32>
    tpu.vector_store %arg10[%c0_23, %c0_24, %c0_25], %33 {strides = array<i32>} : memref<2x8x1xf32, #tpu.memory_space<vmem>>, vector<2x8x1xf32>,
    %c0_26 = arith.constant 0 : index
    %c0_27 = arith.constant 0 : index
    %c0_28 = arith.constant 0 : index
    %35 = vector.load %arg11[%c0_26, %c0_27, %c0_28] : memref<2x8x32xf32, #tpu.memory_space<vmem>>, vector<2x8x32xf32>
    %36 = vector.broadcast %25 : vector<2x8x1xf32> to vector<2x8x32xf32>
    %37 = arith.mulf %36, %35 : vector<2x8x32xf32>
    %38 = arith.truncf %28 : vector<2x8x8xf32> to vector<2x8x8xbf16>
    %c0_29 = arith.constant 0 : index
    %c0_30 = arith.constant 0 : index
    %c0_31 = arith.constant 0 : index
    %c0_32 = arith.constant 0 : index
    %39 = vector.load %arg6[%c0_29, %c0_30, %c0_31, %c0_32] : memref<1x2x8x32xf32, #tpu.memory_space<vmem>>, vector<1x2x8x32xf32>
    %40 = vector.shape_cast %39 : vector<1x2x8x32xf32> to vector<2x8x32xf32>
    %41 = arith.truncf %40 : vector<2x8x32xf32> to vector<2x8x32xbf16>
    "tpu.trace_start"() <{level = 10 : i32, message = "hqk,hkd->hqd"}> : () -> ()
    %cst_33 = arith.constant dense<0.000000e+00> : vector<2x8x32xf32>
    %42 = tpu.matmul %38, %41, %cst_33 {dimension_numbers = #tpu.dot_dimension_numbers<[2], [1], [1], [2], [0, 0, 0, 1, 1, 2], [0], [0]>} : vector<2x8x8xbf16>, vector<2x8x32xbf16>, vector<2x8x32xf32> -> vector<2x8x32xf32>
    "tpu.trace_stop"() : () -> ()
    %43 = arith.addf %37, %42 : vector<2x8x32xf32>
    %c0_34 = arith.constant 0 : index
    %c0_35 = arith.constant 0 : index
    %c0_36 = arith.constant 0 : index
    %44 = vector.load %arg11[%c0_34, %c0_35, %c0_36] : memref<2x8x32xf32, #tpu.memory_space<vmem>>, vector<2x8x32xf32>
    tpu.vector_store %arg11[%c0_34, %c0_35, %c0_36], %43 {strides = array<i32>} : memref<2x8x32xf32, #tpu.memory_space<vmem>>, vector<2x8x32xf32>,
    %c0_37 = arith.constant 0 : index
    %c0_38 = arith.constant 0 : index
    %c0_39 = arith.constant 0 : index
    %45 = vector.load %arg9[%c0_37, %c0_38, %c0_39] : memref<2x8x1xf32, #tpu.memory_space<vmem>>, vector<2x8x1xf32>
    tpu.vector_store %arg9[%c0_37, %c0_38, %c0_39], %23 {strides = array<i32>} : memref<2x8x1xf32, #tpu.memory_space<vmem>>, vector<2x8x1xf32>,
    %c0_i32_40 = arith.constant 0 : i32
    %46 = arith.cmpi eq, %arg3, %c0_i32_40 : i32
    %47 = arith.extui %46 : i1 to i32
    %c0_i32_41 = arith.constant 0 : i32
    %48 = arith.cmpi ne, %47, %c0_i32_41 : i32
    scf.if %48 {
      %c0_42 = arith.constant 0 : index
      %c0_43 = arith.constant 0 : index
      %c0_44 = arith.constant 0 : index
      %49 = vector.load %arg10[%c0_42, %c0_43, %c0_44] : memref<2x8x1xf32, #tpu.memory_space<vmem>>, vector<2x8x1xf32>
      %50 = tpu.reciprocal %49 : vector<2x8x1xf32> -> vector<2x8x1xf32>
      %c0_45 = arith.constant 0 : index
      %c0_46 = arith.constant 0 : index
      %c0_47 = arith.constant 0 : index
      %51 = vector.load %arg11[%c0_45, %c0_46, %c0_47] : memref<2x8x32xf32, #tpu.memory_space<vmem>>, vector<2x8x32xf32>
      %52 = vector.broadcast %50 : vector<2x8x1xf32> to vector<2x8x32xf32>
      %53 = arith.mulf %51, %52 : vector<2x8x32xf32>
      %c0_48 = arith.constant 0 : index
      %c0_49 = arith.constant 0 : index
      %c0_50 = arith.constant 0 : index
      %c0_51 = arith.constant 0 : index
      %54 = vector.load %arg8[%c0_48, %c0_49, %c0_50, %c0_51] : memref<1x2x8x32xf32, #tpu.memory_space<vmem>>, vector<1x2x8x32xf32>
      %55 = vector.shape_cast %54 : vector<1x2x8x32xf32> to vector<2x8x32xf32>
      %56 = vector.shape_cast %53 : vector<2x8x32xf32> to vector<1x2x8x32xf32>
      tpu.vector_store %arg8[%c0_48, %c0_49, %c0_50, %c0_51], %56 {strides = array<i32>} : memref<1x2x8x32xf32, #tpu.memory_space<vmem>>, vector<1x2x8x32xf32>,
    } else {
    }
    return
  }
  func.func @transform_0(%arg0: i32, %arg1: i32, %arg2: i32, %arg3: i32) -> (i32, i32, i32, i32) {
    %c0_i32 = arith.constant 0 : i32
    %c0_i32_0 = arith.constant 0 : i32
    return %arg0, %arg1, %arg2, %c0_i32 : i32, i32, i32, i32
  }
  func.func @transform_1(%arg0: i32, %arg1: i32, %arg2: i32, %arg3: i32) -> (i32, i32, i32, i32) {
    %c0_i32 = arith.constant 0 : i32
    %c0_i32_0 = arith.constant 0 : i32
    return %arg0, %arg1, %arg3, %c0_i32 : i32, i32, i32, i32
  }
  func.func @transform_2(%arg0: i32, %arg1: i32, %arg2: i32, %arg3: i32) -> (i32, i32, i32, i32) {
    %c0_i32 = arith.constant 0 : i32
    %c0_i32_0 = arith.constant 0 : i32
    return %arg0, %arg1, %arg3, %c0_i32 : i32, i32, i32, i32
  }
  func.func @transform_3(%arg0: i32, %arg1: i32, %arg2: i32, %arg3: i32) -> (i32, i32, i32, i32) {
    %c0_i32 = arith.constant 0 : i32
    %c0_i32_0 = arith.constant 0 : i32
    %c0_i32_1 = arith.constant 0 : i32
    return %arg0, %c0_i32, %c0_i32_0, %arg3 : i32, i32, i32, i32
  }
  func.func @transform_4(%arg0: i32, %arg1: i32, %arg2: i32, %arg3: i32) -> (i32, i32, i32, i32) {
    %c0_i32 = arith.constant 0 : i32
    %c0_i32_0 = arith.constant 0 : i32
    return %arg0, %arg1, %arg2, %c0_i32 : i32, i32, i32, i32
  }
}

</mosaic_0001>

<llo_original>
// kernel: tpu_custom_call.1
$region0: #{tpu_custom_call.1}
  #allocation0 [shape = 'u32[]', space=smem, size = 0x4, offset = 0x4, fixed_abs, tag = 'smem constant byte address 0x4 - core index']
  #allocation1 [shape = 'u32[72,128]{1,0:T(1,128)}', space=vmem, size = 0x9000, scoped, tag = 'internal scratch']
  #allocation2 [shape = 'f32[2,8,1]{2,1,0:T(8,128)}', space=vmem, size = 0x2000, scoped, tag = 'scratch operand']
  #allocation3 [shape = 'f32[2,8,1]{2,1,0:T(8,128)}', space=vmem, size = 0x2000, scoped, tag = 'scratch operand']
  #allocation4 [shape = 'f32[2,8,32]{2,1,0:T(8,128)}', space=vmem, size = 0x2000, scoped, tag = 'scratch operand']
  %s0 = inlined_call_operand.hbm [shape: f32[2,2,8,32], index: 0, kind: input, shape index: {}]
  %s1 = inlined_call_operand.hbm [shape: f32[2,2,8,32], index: 1, kind: input, shape index: {}]
  %s2 = inlined_call_operand.hbm [shape: f32[2,2,8,32], index: 2, kind: input, shape index: {}]
  %s3 = inlined_call_operand.vmem [shape: s32[2,1,1,8], index: 3, kind: input, shape index: {}]
  %s4 = inlined_call_operand.hbm [shape: f32[2,2,8,32], index: 4, kind: output, shape index: {}]
  %s5 = sld [smem:[#allocation0]]
  $region69: #{tpu_custom_call.1} parent=0
    _
  %s7 = ssub.s32 1, %s5
  %s8 = scalar_select 0, %s7, %s5
  $region1: #{tpu_custom_call.1} parent=0
    #allocation5 [shape = 'u8[16384]{0}', space=vmem, size = 0x4000, scoped, tag = 'input window, operand 0']
    #allocation6 [shape = 's32[2]{0}', space=sflag, size = 0x8, scoped, tag = 'scoped memory for tpu_custom_call.1']
    #allocation7 [shape = 's32[2]{0}', space=sflag, size = 0x8, scoped, tag = 'scoped memory for tpu_custom_call.1']
    #allocation8 [shape = 'u8[16384]{0}', space=vmem, size = 0x4000, scoped, tag = 'input window, operand 1']
    #allocation9 [shape = 's32[2]{0}', space=sflag, size = 0x8, scoped, tag = 'scoped memory for tpu_custom_call.1']
    #allocation10 [shape = 'u8[16384]{0}', space=vmem, size = 0x4000, scoped, tag = 'input window, operand 2']
    #allocation11 [shape = 'u8[16384]{0}', space=vmem, size = 0x4000, scoped, tag = 'output window, operand 0']
    %9 = vsyncpa [#allocation6], 0
    %s10 = scalar_lea.sflag [#allocation6], 1
    %11 = vsyncpa %s10, 0
    %12 = vsyncpa [#allocation9], 0
    %s13 = scalar_lea.sflag [#allocation9], 1
    %14 = vsyncpa %s13, 0
    %15 = vsyncpa [#allocation7], 0
    %s16 = scalar_lea.sflag [#allocation7], 1
    %17 = vsyncpa %s16, 0
    loop: start=0, step=1, limit=4
    $region2: #{tpu_custom_call.1} parent=1 // loop_pre_header
      _
    $region3: #{tpu_custom_call.1} parent=1 // loop_header
      %s19 = sphi 0, %s23
      %p20 = scmp.ge.s32.totalorder %s19, 4
      %s26 = sphi 0, %s52
      %s27 = sphi 0, %s48
      %s28 = sphi 0, %s44
      %s29 = sphi 0, %s40
      %s30 = sphi 0, %s26
      %s31 = sphi 0, %s27
      %s32 = sphi 0, %s28
      %s33 = sphi 0, %s29
      %s34 = sphi 0, %s30
      %s35 = sphi 0, %s31
      %s36 = sphi 0, %s32
      %s37 = sphi 0, %s33
      %s59 = sphi 0, %s61
      %s62 = sphi 0, %s59
      %s63 = sphi 0, %s62
      %s79 = sphi 0, %s63
      %s89 = sphi 0, %s91
      %s92 = sphi 0, %s89
      %s93 = sphi 0, %s92
      %s109 = sphi 0, %s93
      %s119 = sphi 0, %s121
      %s122 = sphi 0, %s119
      %s123 = sphi 0, %s122
      %s139 = sphi 0, %s123
      %s147 = sphi 0, %s149
      %s150 = sphi 0, %s147
      %s151 = sphi 0, %s150
      %s167 = sphi 0, %s151
      %s177 = sphi 0, %s179
      %s180 = sphi 0, %s177
      %s181 = sphi 0, %s180
      %s197 = sphi 0, %s181
    $region4: #{tpu_custom_call.1} parent=1 // loop_header_branch
      %22 = sbr.rel (%p20) target = $region8
    $region5: #{tpu_custom_call.1} parent=1 // loop_body
      %s24 = ssub.s32 %s19, 1
      %s25 = ssub.s32 %s19, 2
      %s38 = sadd.s32 1, %s29
      %p39 = scmp.ge.s32.totalorder %s38, 1
      %s40 = scalar_select %p39, 0, %s38
      %s41 = sadd.s32 1, %s28
      %s42 = scalar_select %p39, %s41, %s28
      %p43 = scmp.ge.s32.totalorder %s42, 1
      %s44 = scalar_select %p43, 0, %s42
      %s45 = sadd.s32 1, %s27
      %s46 = scalar_select %p43, %s45, %s27
      %p47 = scmp.ge.s32.totalorder %s46, 1
      %s48 = scalar_select %p47, 0, %s46
      %s49 = sadd.s32 1, %s26
      %s50 = scalar_select %p47, %s49, %s26
      %p51 = scmp.ge.s32.totalorder %s50, 2
      %s52 = scalar_select %p51, 0, %s50
      %s53 = ssub.s32 %s26, %s52
      %s54 = ssub.s32 %s27, %s48
      %s55 = sor.u32 %s53, %s54
      %s56 = ssub.s32 %s28, %s44
      %s57 = sor.u32 %s55, %s56
      %p58 = scmp.eq.s32.totalorder %s57, 0
      %s60 = sadd.s32 %s59, 1
      %s61 = scalar_select %p58, %s59, %s60
      %p64 = pneg %p58
      %p65 = scmp.eq.s32.totalorder %s19, 1
      %p66 = por %p64, %p65
      %p67 = scmp.ne.s32.totalorder %s59, %s62
      %p68 = scmp.eq.s32.totalorder %s19, 0
      %p69 = por %p67, %p68
      %p70 = scmp.ne.s32.totalorder %s59, %s62
      %p71 = scmp.eq.s32.totalorder %s24, 1
      %p72 = por %p70, %p71
      %p73 = scmp.ne.s32.totalorder %s62, %s63
      %p74 = scmp.eq.s32.totalorder %s24, 0
      %p75 = por %p73, %p74
      %p76 = scmp.ne.s32.totalorder %s62, %s63
      %p77 = scmp.eq.s32.totalorder %s25, 1
      %p78 = por %p76, %p77
      %p80 = scmp.ne.s32.totalorder %s63, %s79
      %p81 = scmp.eq.s32.totalorder %s25, 0
      %p82 = por %p80, %p81
      %s83 = ssub.s32 %s26, %s52
      %s84 = ssub.s32 %s27, %s48
      %s85 = sor.u32 %s83, %s84
      %s86 = ssub.s32 %s29, %s40
      %s87 = sor.u32 %s85, %s86
      %p88 = scmp.eq.s32.totalorder %s87, 0
      %s90 = sadd.s32 %s89, 1
      %s91 = scalar_select %p88, %s89, %s90
      %p94 = pneg %p88
      %p95 = scmp.eq.s32.totalorder %s19, 1
      %p96 = por %p94, %p95
      %p97 = scmp.ne.s32.totalorder %s89, %s92
      %p98 = scmp.eq.s32.totalorder %s19, 0
      %p99 = por %p97, %p98
      %p100 = scmp.ne.s32.totalorder %s89, %s92
      %p101 = scmp.eq.s32.totalorder %s24, 1
      %p102 = por %p100, %p101
      %p103 = scmp.ne.s32.totalorder %s92, %s93
      %p104 = scmp.eq.s32.totalorder %s24, 0
      %p105 = por %p103, %p104
      %p106 = scmp.ne.s32.totalorder %s92, %s93
      %p107 = scmp.eq.s32.totalorder %s25, 1
      %p108 = por %p106, %p107
      %p110 = scmp.ne.s32.totalorder %s93, %s109
      %p111 = scmp.eq.s32.totalorder %s25, 0
      %p112 = por %p110, %p111
      %s113 = ssub.s32 %s26, %s52
      %s114 = ssub.s32 %s27, %s48
      %s115 = sor.u32 %s113, %s114
      %s116 = ssub.s32 %s29, %s40
      %s117 = sor.u32 %s115, %s116
      %p118 = scmp.eq.s32.totalorder %s117, 0
      %s120 = sadd.s32 %s119, 1
      %s121 = scalar_select %p118, %s119, %s120
      %p124 = pneg %p118
      %p125 = scmp.eq.s32.totalorder %s19, 1
      %p126 = por %p124, %p125
      %p127 = scmp.ne.s32.totalorder %s119, %s122
      %p128 = scmp.eq.s32.totalorder %s19, 0
      %p129 = por %p127, %p128
      %p130 = scmp.ne.s32.totalorder %s119, %s122
      %p131 = scmp.eq.s32.totalorder %s24, 1
      %p132 = por %p130, %p131
      %p133 = scmp.ne.s32.totalorder %s122, %s123
      %p134 = scmp.eq.s32.totalorder %s24, 0
      %p135 = por %p133, %p134
      %p136 = scmp.ne.s32.totalorder %s122, %s123
      %p137 = scmp.eq.s32.totalorder %s25, 1
      %p138 = por %p136, %p137
      %p140 = scmp.ne.s32.totalorder %s123, %s139
      %p141 = scmp.eq.s32.totalorder %s25, 0
      %p142 = por %p140, %p141
      %s143 = ssub.s32 %s26, %s52
      %s144 = ssub.s32 %s29, %s40
      %s145 = sor.u32 %s143, %s144
      %p146 = scmp.eq.s32.totalorder %s145, 0
      %s148 = sadd.s32 %s147, 1
      %s149 = scalar_select %p146, %s147, %s148
      %p152 = pneg %p146
      %p153 = scmp.eq.s32.totalorder %s19, 1
      %p154 = por %p152, %p153
      %p155 = scmp.ne.s32.totalorder %s147, %s150
      %p156 = scmp.eq.s32.totalorder %s19, 0
      %p157 = por %p155, %p156
      %p158 = scmp.ne.s32.totalorder %s147, %s150
      %p159 = scmp.eq.s32.totalorder %s24, 1
      %p160 = por %p158, %p159
      %p161 = scmp.ne.s32.totalorder %s150, %s151
      %p162 = scmp.eq.s32.totalorder %s24, 0
      %p163 = por %p161, %p162
      %p164 = scmp.ne.s32.totalorder %s150, %s151
      %p165 = scmp.eq.s32.totalorder %s25, 1
      %p166 = por %p164, %p165
      %p168 = scmp.ne.s32.totalorder %s151, %s167
      %p169 = scmp.eq.s32.totalorder %s25, 0
      %p170 = por %p168, %p169
      %s171 = ssub.s32 %s26, %s52
      %s172 = ssub.s32 %s27, %s48
      %s173 = sor.u32 %s171, %s172
      %s174 = ssub.s32 %s28, %s44
      %s175 = sor.u32 %s173, %s174
      %p176 = scmp.eq.s32.totalorder %s175, 0
      %s178 = sadd.s32 %s177, 1
      %s179 = scalar_select %p176, %s177, %s178
      %p182 = pneg %p176
      %p183 = scmp.eq.s32.totalorder %s19, 1
      %p184 = por %p182, %p183
      %p185 = scmp.ne.s32.totalorder %s177, %s180
      %p186 = scmp.eq.s32.totalorder %s19, 0
      %p187 = por %p185, %p186
      %p188 = scmp.ne.s32.totalorder %s177, %s180
      %p189 = scmp.eq.s32.totalorder %s24, 1
      %p190 = por %p188, %p189
      %p191 = scmp.ne.s32.totalorder %s180, %s181
      %p192 = scmp.eq.s32.totalorder %s24, 0
      %p193 = por %p191, %p192
      %p194 = scmp.ne.s32.totalorder %s180, %s181
      %p195 = scmp.eq.s32.totalorder %s25, 1
      %p196 = por %p194, %p195
      %p198 = scmp.ne.s32.totalorder %s181, %s197
      %p199 = scmp.eq.s32.totalorder %s25, 0
      %p200 = por %p198, %p199
      %p201 = scmp.le.s32.totalorder 1, %s19
      %p202 = scmp.lt.s32.totalorder %s19, 3
      %p203 = pnand %p201, %p202
      %p204 = pneg %p203
      // Predicated region
      $region9: #{tpu_custom_call.1} parent=5 // pred_check
        _
      $region10: #{tpu_custom_call.1} parent=5 // pred_check_branch
        %206 = sbr.rel (%p203) target = $region12
      $region11: #{tpu_custom_call.1} parent=5 // pred_region
        %s207 = ssub.s32 %s19, 1
      $region12: #{tpu_custom_call.1} parent=5 // pred_fallthru
        _
      %p208 = scmp.lt.s32.totalorder %s19, 2
      // Predicated region
      $region13: #{tpu_custom_call.1} parent=5 // pred_check
        %p209 = pneg %p208
      $region14: #{tpu_custom_call.1} parent=5 // pred_check_branch
        %211 = sbr.rel (%p209) target = $region16
      $region15: #{tpu_custom_call.1} parent=5 // pred_region
        // Predicated region
        $region17: #{tpu_custom_call.1} parent=15 // pred_check
          %p212 = pneg %p69
        $region18: #{tpu_custom_call.1} parent=15 // pred_check_branch
          %214 = sbr.rel (%p212) target = $region20
        $region19: #{tpu_custom_call.1} parent=15 // pred_region
          %s215 = sand.u32 %s59, 1
          %s216 = scalar_lea.sflag [#allocation6], %s215
          %s217 = sand.u32 %s59, 1
          %s218 = smul.addr %s217, 16
          %s219 = scalar_lea.vmem [#allocation5], %s218
          %s220 = smul.u32 2, %s27
          %222 = vsyncadd %s216, 0
          %s223 = sadd.s32 %s28, %s220
          %s224 = smul.addr %s26, 2
          %s225 = sadd.s32 %s223, %s224
          %s226 = smul.addr %s225, 8
          %s227 = scalar_lea.hbm %s0, %s226
          %s228 = sshll.u32 %s227, 4
          %s229 = int_to_ptr.hbm [resolvable:$true] %s228
          %s230 = sshll.u32 %s219, 4
          %s231 = int_to_ptr.vmem [resolvable:$true] %s230
          %236 = dma.hbm_to_vmem [thread:$0]  %s229, 256, %s231, %s216, 128, 128, 8
        $region20: #{tpu_custom_call.1} parent=15 // pred_fallthru
          _
        // Predicated region
        $region21: #{tpu_custom_call.1} parent=15 // pred_check
          %p237 = pneg %p99
        $region22: #{tpu_custom_call.1} parent=15 // pred_check_branch
          %239 = sbr.rel (%p237) target = $region24
        $region23: #{tpu_custom_call.1} parent=15 // pred_region
          %s240 = sand.u32 %s19, 1
          %s241 = scalar_lea.sflag [#allocation9], %s240
          %s242 = sand.u32 %s89, 1
          %s243 = smul.addr %s242, 16
          %s244 = scalar_lea.vmem [#allocation8], %s243
          %s245 = smul.u32 2, %s27
          %247 = vsyncadd %s241, 0
          %s248 = sadd.s32 %s29, %s245
          %s249 = smul.addr %s26, 2
          %s250 = sadd.s32 %s248, %s249
          %s251 = smul.addr %s250, 8
          %s252 = scalar_lea.hbm %s1, %s251
          %s253 = sshll.u32 %s252, 4
          %s254 = int_to_ptr.hbm [resolvable:$true] %s253
          %s255 = sshll.u32 %s244, 4
          %s256 = int_to_ptr.vmem [resolvable:$true] %s255
          %261 = dma.hbm_to_vmem [thread:$0]  %s254, 256, %s256, %s241, 128, 128, 8
        $region24: #{tpu_custom_call.1} parent=15 // pred_fallthru
          _
        // Predicated region
        $region25: #{tpu_custom_call.1} parent=15 // pred_check
          %p262 = pneg %p129
        $region26: #{tpu_custom_call.1} parent=15 // pred_check_branch
          %264 = sbr.rel (%p262) target = $region28
        $region27: #{tpu_custom_call.1} parent=15 // pred_region
          %s265 = sand.u32 %s19, 1
          %s266 = scalar_lea.sflag [#allocation9], %s265
          %s267 = sand.u32 %s119, 1
          %s268 = smul.addr %s267, 16
          %s269 = scalar_lea.vmem [#allocation10], %s268
          %s270 = smul.u32 2, %s27
          %272 = vsyncadd %s266, 0
          %s273 = sadd.s32 %s29, %s270
          %s274 = smul.addr %s26, 2
          %s275 = sadd.s32 %s273, %s274
          %s276 = smul.addr %s275, 8
          %s277 = scalar_lea.hbm %s2, %s276
          %s278 = sshll.u32 %s277, 4
          %s279 = int_to_ptr.hbm [resolvable:$true] %s278
          %s280 = sshll.u32 %s269, 4
          %s281 = int_to_ptr.vmem [resolvable:$true] %s280
          %286 = dma.hbm_to_vmem [thread:$0]  %s279, 256, %s281, %s266, 128, 128, 8
        $region28: #{tpu_custom_call.1} parent=15 // pred_fallthru
          _
        // Predicated region
        $region29: #{tpu_custom_call.1} parent=15 // pred_check
          %p287 = pneg %p157
        $region30: #{tpu_custom_call.1} parent=15 // pred_check_branch
          %289 = sbr.rel (%p287) target = $region32
        $region31: #{tpu_custom_call.1} parent=15 // pred_region
          %p290 = scmp.lt.s32.totalorder %s26, 1
          %s291 = scalar_select %p290, %s26, 1
          %p292 = scmp.lt.s32.totalorder %s29, 0
          %s293 = scalar_select %p292, %s29, 0
          %s294 = sadd.s32 %s293, %s291
          %s295 = scalar_lea.vmem %s3, %s294
        $region32: #{tpu_custom_call.1} parent=15 // pred_fallthru
          _
      $region16: #{tpu_custom_call.1} parent=5 // pred_fallthru
        _
      %p296 = scmp.le.s32.totalorder 1, %s19
      %p297 = scmp.lt.s32.totalorder %s19, 3
      %p298 = pnand %p296, %p297
      %p299 = pneg %p298
      // Predicated region
      $region33: #{tpu_custom_call.1} parent=5 // pred_check
        _
      $region34: #{tpu_custom_call.1} parent=5 // pred_check_branch
        %301 = sbr.rel (%p298) target = $region36
      $region35: #{tpu_custom_call.1} parent=5 // pred_region
        %s302 = ssub.s32 %s19, 1
        %s303 = sand.u32 %s62, 1
        %s304 = scalar_lea.sflag [#allocation6], %s303
        %s305 = sand.u32 %s62, 1
        %s306 = smul.addr %s305, 16
        %s307 = scalar_lea.vmem [#allocation5], %s306
        // Predicated region
        $region37: #{tpu_custom_call.1} parent=35 // pred_check
          %p308 = pneg %p75
        $region38: #{tpu_custom_call.1} parent=35 // pred_check_branch
          %310 = sbr.rel (%p308) target = $region40
        $region39: #{tpu_custom_call.1} parent=35 // pred_region
          %312 = dma.done %s304, 256
        $region40: #{tpu_custom_call.1} parent=35 // pred_fallthru
          _
        %s313 = sand.u32 %s24, 1
        %s314 = scalar_lea.sflag [#allocation9], %s313
        %s315 = sand.u32 %s92, 1
        %s316 = smul.addr %s315, 16
        %s317 = scalar_lea.vmem [#allocation8], %s316
        // Predicated region
        $region41: #{tpu_custom_call.1} parent=35 // pred_check
          %p318 = pneg %p105
        $region42: #{tpu_custom_call.1} parent=35 // pred_check_branch
          %320 = sbr.rel (%p318) target = $region44
        $region43: #{tpu_custom_call.1} parent=35 // pred_region
          %322 = dma.done %s314, 256
        $region44: #{tpu_custom_call.1} parent=35 // pred_fallthru
          _
        %s323 = sand.u32 %s24, 1
        %s324 = scalar_lea.sflag [#allocation9], %s323
        %s325 = sand.u32 %s122, 1
        %s326 = smul.addr %s325, 16
        %s327 = scalar_lea.vmem [#allocation10], %s326
        // Predicated region
        $region45: #{tpu_custom_call.1} parent=35 // pred_check
          %p328 = pneg %p135
        $region46: #{tpu_custom_call.1} parent=35 // pred_check_branch
          %330 = sbr.rel (%p328) target = $region48
        $region47: #{tpu_custom_call.1} parent=35 // pred_region
          %332 = dma.done %s324, 256
        $region48: #{tpu_custom_call.1} parent=35 // pred_fallthru
          _
        %s333 = sand.u32 %s62, 1
        %s334 = scalar_lea.sflag [#allocation6], %s333
        %s335 = sand.u32 %s62, 1
        %s336 = smul.addr %s335, 16
        %s337 = scalar_lea.vmem [#allocation5], %s336
        %p338 = pneg %p75
        %p339 = pneg %p72
        %s340 = sand.u32 %s24, 1
        %s341 = scalar_lea.sflag [#allocation9], %s340
        %s342 = sand.u32 %s92, 1
        %s343 = smul.addr %s342, 16
        %s344 = scalar_lea.vmem [#allocation8], %s343
        %p345 = pneg %p105
        %p346 = pneg %p102
        %s347 = sand.u32 %s24, 1
        %s348 = scalar_lea.sflag [#allocation9], %s347
        %s349 = sand.u32 %s122, 1
        %s350 = smul.addr %s349, 16
        %s351 = scalar_lea.vmem [#allocation10], %s350
        %p352 = pneg %p135
        %p353 = pneg %p132
        %p354 = scmp.lt.s32.totalorder %s30, 1
        %s355 = scalar_select %p354, %s30, 1
        %p356 = scmp.lt.s32.totalorder %s33, 0
        %s357 = scalar_select %p356, %s33, 0
        %s358 = sadd.s32 %s357, %s355
        %s359 = scalar_lea.vmem %s3, %s358
        %p360 = pneg %p163
        %p361 = pneg %p160
        %p362 = pneg %p193
        %p363 = pneg %p190
        %s364 = sand.u32 %s180, 1
        %s365 = scalar_lea.sflag [#allocation7], %s364
        %s366 = sand.u32 %s180, 1
        %s367 = smul.addr %s366, 16
        %s368 = scalar_lea.vmem [#allocation11], %s367
        %s369 = smul.u32 2, %s31
        %s370 = smul.u32 2, %s31
        %s371 = smul.u32 2, %s31
        %p372 = scmp.lt.s32.totalorder %s30, 1
        %s373 = scalar_select %p372, %s30, 1
        %p374 = scmp.lt.s32.totalorder %s33, 0
        %s375 = scalar_select %p374, %s33, 0
        %s376 = sadd.s32 %s375, %s373
        %s377 = scalar_lea.vmem %s3, %s376
        %s378 = smul.u32 2, %s31
        %p380 = scmp.eq.s32.totalorder %s33, 0
        // Predicated region
        $region49: #{tpu_custom_call.1} parent=35 // pred_check
          %p381 = pneg %p380
        $region50: #{tpu_custom_call.1} parent=35 // pred_check_branch
          %383 = sbr.rel (%p381) target = $region52
        $region51: #{tpu_custom_call.1} parent=35 // pred_region
          %vm384 = vcmask 7168
          %385 = vst.msk [vmem:[#allocation2] sm:$0xff] %vm384, -1e+30
          %386 = vst.msk [vmem:[#allocation2 + $0x8] sm:$0xff] %vm384, -1e+30
          %387 = vst.msk [vmem:[#allocation3] sm:$0xff] %vm384, 0.0
          %388 = vst.msk [vmem:[#allocation3 + $0x8] sm:$0xff] %vm384, 0.0
          %vm389 = vcmask 261120
          %390 = vst.msk [vmem:[#allocation4] sm:$0xff] %vm389, 0.0
          %391 = vst.msk [vmem:[#allocation4 + $0x8] sm:$0xff] %vm389, 0.0
        $region52: #{tpu_custom_call.1} parent=35 // pred_fallthru
          _
        %v392 = vld [vmem:[%s307] sm:$0xff]
        %v393 = vld [vmem:[%s307 + $0x8] sm:$0xff]
        %v394 = vmul.f32 %v392, 0.17677669
        %v395 = vmul.f32 %v393, 0.17677669
        %v396 = vpack.c.bf16 %v394, %v394
        %v397 = vpack.c.bf16 %v395, %v395
        %v398 = vld [vmem:[%s317] sm:$0xff]
        %v399 = vld [vmem:[%s317 + $0x8] sm:$0xff]
        %v400 = vpack.c.bf16 %v398, %v398
        %v401 = vpack.c.bf16 %v399, %v399
        %vm402 = vcmask 261120
        %v404 = vsel %vm402, %v396, 0
        %v407 = vsel %vm402, %v400, 0
        %409 = vmatpush.bf16.xpose.msra.mxu0 0
        %410 = vmatpush.bf16.xpose.msra.mxu0 0
        %411 = vmatpush.bf16.xpose.msra.mxu0 0
        %412 = vmatpush.bf16.xpose.msra.mxu0 0
        %413 = vmatpush.bf16.xpose.msra.mxu0 0
        %414 = vmatpush.bf16.xpose.msra.mxu0 0
        %415 = vmatpush.bf16.xpose.msra.mxu0 0
        %416 = vmatpush.bf16.xpose.msra.mxu0 %v407
        %417 = vmatmul.bf16.gmra.mxu0 %v404
        %v418 = vpop.f32.mrf.mxu0
        %v419 = vadd.f32 0.0, %v418
        %v420 = vpop.f32.mrf.mxu0
        %421 = vdwg.mxu0
        %v423 = vsel %vm402, %v397, 0
        %v426 = vsel %vm402, %v401, 0
        %428 = vmatpush.bf16.xpose.msra.mxu0 0
        %429 = vmatpush.bf16.xpose.msra.mxu0 0
        %430 = vmatpush.bf16.xpose.msra.mxu0 0
        %431 = vmatpush.bf16.xpose.msra.mxu0 0
        %432 = vmatpush.bf16.xpose.msra.mxu0 0
        %433 = vmatpush.bf16.xpose.msra.mxu0 0
        %434 = vmatpush.bf16.xpose.msra.mxu0 0
        %435 = vmatpush.bf16.xpose.msra.mxu0 %v426
        %436 = vmatmul.bf16.gmra.mxu0 %v423
        %v437 = vpop.f32.mrf.mxu0
        %v438 = vadd.f32 0.0, %v437
        %v439 = vpop.f32.mrf.mxu0
        %440 = vdwg.mxu0
        %v441 = vld [vmem:[%s377] sm:$0x1]
        %vm442 = vcmp.ne.s32.totalorder %v441, 0
        %v443 = vsel %vm442, 1, 0
        %v444 = vperm.slane %v443, 0
        %vm445 = vcmp.eq.s32.totalorder %v444, 1
        %v446 = vsel %vm445, -1e+09, %v419
        %v447 = vsel %vm445, -1e+09, %v438
        %v448 = vld [vmem:[#allocation2] sm:$0xff]
        %v449 = vld [vmem:[#allocation2 + $0x8] sm:$0xff]
        %vm450 = vcmask 64512
        %v451 = vsel %vm450, %v446, -inf
        %452 = vmax.xlane.f32.xlu0 %v451
        %v453 = vpop.xlane.xlu0 %452
        %v454 = vsel %vm450, %v447, -inf
        %455 = vmax.xlane.f32.xlu0 %v454
        %v456 = vpop.xlane.xlu0 %455
        %v457 = vmax.f32 %v448, %v453
        %v458 = vmax.f32 %v449, %v456
        %v459 = vsub.f32 %v448, %v457
        %v460 = vsub.f32 %v449, %v458
        %v461 = vmul.f32 %v459, 1.442695
        %v462 = vpow.pop %v461
        %v463 = vmul.f32 %v460, 1.442695
        %v464 = vpow.pop %v463
        %466 = vset.pattern.permute.xlu0 0
        %467 = vperm.xlu0 %466, %v457
        %v468 = vpop.permute.xlu0 %467
        %471 = vset.pattern.permute.xlu0 0
        %472 = vperm.xlu0 %471, %v458
        %v473 = vpop.permute.xlu0 %472
        %v475 = vsub.f32 %v446, %v468
        %v476 = vsub.f32 %v447, %v473
        %v477 = vmul.f32 %v475, 1.442695
        %v478 = vpow.pop %v477
        %v479 = vmul.f32 %v476, 1.442695
        %v480 = vpow.pop %v479
        %v481 = vld [vmem:[#allocation3] sm:$0xff]
        %v482 = vld [vmem:[#allocation3 + $0x8] sm:$0xff]
        %v483 = vmul.f32 %v462, %v481
        %v484 = vmul.f32 %v464, %v482
        %v485 = vsel %vm450, %v478, 0.0
        %486 = vadd.xlane.f32.xlu0 %v485
        %v487 = vpop.xlane.xlu0 %486
        %v488 = vsel %vm450, %v480, 0.0
        %489 = vadd.xlane.f32.xlu0 %v488
        %v490 = vpop.xlane.xlu0 %489
        %v491 = vadd.f32 %v483, %v487
        %v492 = vadd.f32 %v484, %v490
        %vm493 = vcmask 7168
        %494 = vst.msk [vmem:[#allocation3] sm:$0xff] %vm493, %v491
        %495 = vst.msk [vmem:[#allocation3 + $0x8] sm:$0xff] %vm493, %v492
        %v496 = vld [vmem:[#allocation4] sm:$0xff]
        %v497 = vld [vmem:[#allocation4 + $0x8] sm:$0xff]
        %499 = vset.pattern.permute.xlu0 0
        %500 = vperm.xlu0 %499, %v462
        %v501 = vpop.permute.xlu0 %500
        %504 = vset.pattern.permute.xlu0 0
        %505 = vperm.xlu0 %504, %v464
        %v506 = vpop.permute.xlu0 %505
        %v508 = vmul.f32 %v501, %v496
        %v509 = vmul.f32 %v506, %v497
        %v510 = vpack.c.bf16 %v478, %v478
        %v511 = vpack.c.bf16 %v480, %v480
        %v512 = vld [vmem:[%s327] sm:$0xff]
        %v513 = vld [vmem:[%s327 + $0x8] sm:$0xff]
        %v514 = vpack.c.bf16 %v512, %v512
        %v515 = vpack.c.bf16 %v513, %v513
        %v517 = vsel %vm450, %v510, 0
        %vm519 = vcmask 1043456
        %v521 = vsel %vm519, %v514, 0
        %523 = vmatpush.bf16.msra.mxu0 0
        %524 = vmatpush.bf16.msra.mxu0 0
        %525 = vmatpush.bf16.msra.mxu0 0
        %526 = vmatpush.bf16.msra.mxu0 0
        %527 = vmatpush.bf16.msra.mxu0 0
        %528 = vmatpush.bf16.msra.mxu0 0
        %529 = vmatpush.bf16.msra.mxu0 0
        %530 = vmatpush.bf16.msra.mxu0 %v521
        %531 = vmatmul.bf16.gmra.mxu0 %v517
        %v532 = vpop.f32.mrf.mxu0
        %v533 = vadd.f32 0.0, %v532
        %v534 = vpop.f32.mrf.mxu0
        %535 = vdwg.mxu0
        %v537 = vsel %vm450, %v511, 0
        %v540 = vsel %vm519, %v515, 0
        %542 = vmatpush.bf16.msra.mxu0 0
        %543 = vmatpush.bf16.msra.mxu0 0
        %544 = vmatpush.bf16.msra.mxu0 0
        %545 = vmatpush.bf16.msra.mxu0 0
        %546 = vmatpush.bf16.msra.mxu0 0
        %547 = vmatpush.bf16.msra.mxu0 0
        %548 = vmatpush.bf16.msra.mxu0 0
        %549 = vmatpush.bf16.msra.mxu0 %v540
        %550 = vmatmul.bf16.gmra.mxu0 %v537
        %v551 = vpop.f32.mrf.mxu0
        %v552 = vadd.f32 0.0, %v551
        %v553 = vpop.f32.mrf.mxu0
        %554 = vdwg.mxu0
        %v555 = vadd.f32 %v508, %v533
        %v556 = vadd.f32 %v509, %v552
        %557 = vst.msk [vmem:[#allocation4] sm:$0xff] %vm402, %v555
        %558 = vst.msk [vmem:[#allocation4 + $0x8] sm:$0xff] %vm402, %v556
        %559 = vst.msk [vmem:[#allocation2] sm:$0xff] %vm493, %v457
        %560 = vst.msk [vmem:[#allocation2 + $0x8] sm:$0xff] %vm493, %v458
        // Predicated region
        $region53: #{tpu_custom_call.1} parent=35 // pred_check
          %p561 = pneg %p380
        $region54: #{tpu_custom_call.1} parent=35 // pred_check_branch
          %563 = sbr.rel (%p561) target = $region56
        $region55: #{tpu_custom_call.1} parent=35 // pred_region
          %v564 = vld [vmem:[#allocation3] sm:$0xff]
          %v565 = vld [vmem:[#allocation3 + $0x8] sm:$0xff]
          %v566 = vrcp.pop %v564
          %v567 = vmul.f32 %v564, %v566
          %v568 = vsub.f32 1.0, %v567
          %v569 = vmul.f32 %v566, %v568
          %v570 = vadd.f32 %v566, %v569
          %vm571 = vweird.f32 %v564
          %vm572 = vweird.f32 %v566
          %vm573 = vmor %vm571, %vm572
          %v574 = vsel %vm573, %v566, %v570
          %v575 = vand.u32 2147483647, %v564
          %vm576 = vcmp.eq.f32.partialorder %v575, 8.507059e+37
          %v577 = vand.u32 %v564, 2147483648
          %v578 = vor.u32 1.1754944e-38, %v577
          %v579 = vsel %vm576, %v578, %v574
          %v580 = vrcp.pop %v565
          %v581 = vmul.f32 %v565, %v580
          %v582 = vsub.f32 1.0, %v581
          %v583 = vmul.f32 %v580, %v582
          %v584 = vadd.f32 %v580, %v583
          %vm585 = vweird.f32 %v565
          %vm586 = vweird.f32 %v580
          %vm587 = vmor %vm585, %vm586
          %v588 = vsel %vm587, %v580, %v584
          %v589 = vand.u32 2147483647, %v565
          %vm590 = vcmp.eq.f32.partialorder %v589, 8.507059e+37
          %v591 = vand.u32 %v565, 2147483648
          %v592 = vor.u32 1.1754944e-38, %v591
          %v593 = vsel %vm590, %v592, %v588
          %v594 = vld [vmem:[#allocation4] sm:$0xff]
          %v595 = vld [vmem:[#allocation4 + $0x8] sm:$0xff]
          %597 = vset.pattern.permute.xlu0 0
          %598 = vperm.xlu0 %597, %v579
          %v599 = vpop.permute.xlu0 %598
          %602 = vset.pattern.permute.xlu0 0
          %603 = vperm.xlu0 %602, %v593
          %v604 = vpop.permute.xlu0 %603
          %v606 = vmul.f32 %v594, %v599
          %v607 = vmul.f32 %v595, %v604
          %608 = vst.msk [vmem:[%s368] sm:$0xff] %vm402, %v606
          %609 = vst.msk [vmem:[%s368 + $0x8] sm:$0xff] %vm402, %v607
        $region56: #{tpu_custom_call.1} parent=35 // pred_fallthru
          _
        %s610 = sand.u32 %s180, 1
        %s611 = scalar_lea.sflag [#allocation7], %s610
        %s612 = sand.u32 %s180, 1
        %s613 = smul.addr %s612, 16
        %s614 = scalar_lea.vmem [#allocation11], %s613
        // Predicated region
        $region57: #{tpu_custom_call.1} parent=35 // pred_check
          %p615 = pneg %p190
        $region58: #{tpu_custom_call.1} parent=35 // pred_check_branch
          %617 = sbr.rel (%p615) target = $region60
        $region59: #{tpu_custom_call.1} parent=35 // pred_region
          %s618 = smul.u32 2, %s31
          %620 = vsyncadd %s611, 0
          %s621 = sadd.s32 %s32, %s618
          %s622 = smul.addr %s30, 2
          %s623 = sadd.s32 %s621, %s622
          %s624 = smul.addr %s623, 8
          %s625 = scalar_lea.hbm %s4, %s624
          %s626 = sshll.u32 %s614, 4
          %s627 = int_to_ptr.vmem [resolvable:$true] %s626
          %s628 = sshll.u32 %s625, 4
          %s629 = int_to_ptr.hbm [resolvable:$true] %s628
          %634 = dma.vmem_to_hbm [thread:$0]  %s627, 256, %s629, %s611, 128, 128, 8
        $region60: #{tpu_custom_call.1} parent=35 // pred_fallthru
          _
      $region36: #{tpu_custom_call.1} parent=5 // pred_fallthru
        _
      %p635 = scmp.le.s32.totalorder 2, %s19
      // Predicated region
      $region61: #{tpu_custom_call.1} parent=5 // pred_check
        %p636 = pneg %p635
      $region62: #{tpu_custom_call.1} parent=5 // pred_check_branch
        %638 = sbr.rel (%p636) target = $region64
      $region63: #{tpu_custom_call.1} parent=5 // pred_region
        %s639 = ssub.s32 %s19, 2
        // Predicated region
        $region65: #{tpu_custom_call.1} parent=63 // pred_check
          %p640 = pneg %p196
        $region66: #{tpu_custom_call.1} parent=63 // pred_check_branch
          %642 = sbr.rel (%p640) target = $region68
        $region67: #{tpu_custom_call.1} parent=63 // pred_region
          %s643 = sand.u32 %s181, 1
          %s644 = scalar_lea.sflag [#allocation7], %s643
          %s645 = sand.u32 %s181, 1
          %s646 = smul.addr %s645, 16
          %s647 = scalar_lea.vmem [#allocation11], %s646
          %649 = dma.done %s644, 256
        $region68: #{tpu_custom_call.1} parent=63 // pred_fallthru
          _
      $region64: #{tpu_custom_call.1} parent=5 // pred_fallthru
        _
    $region6: #{tpu_custom_call.1} parent=1 // loop_footer
      %s23 = sadd.s32 1, %s19
    $region7: #{tpu_custom_call.1} parent=1 // loop_footer_branch
      %18 = sbr.rel target = $region3
    $region8: #{tpu_custom_call.1} parent=1 // loop_exit
      _
    %650 = vsyncpa [#allocation6], 1
    %s651 = scalar_lea.sflag [#allocation6], 1
    %652 = vsyncpa %s651, 1
    %653 = vsyncpa [#allocation9], 1
    %s654 = scalar_lea.sflag [#allocation9], 1
    %655 = vsyncpa %s654, 1
    %656 = vsyncpa [#allocation7], 1
    %s657 = scalar_lea.sflag [#allocation7], 1
    %658 = vsyncpa %s657, 1

</llo_original>
